<compile_context>
chip_gen: v7x
topology: tpu7x:2x2x1
jax: 0.10.0
libtpu: 0.0.40
codegen_flags: <defaults>
</compile_context>

<pallas_src>
import jax
import jax.numpy as jnp
from jax.experimental import pallas as pl
from jax.experimental.pallas import tpu as pltpu

C_IN = 93
C_OUT = 100
K = 3
STRIDE = 3
PADDING = 1

# The pure-reshape phase interleave below relies on non-overlapping phases.
assert K == STRIDE, "phase scatter assumes kernel_size == stride"

C_OUT_PAD = 128          # lane-dense per-phase output -> fused last dim = 3*128 = 384
N_OUT = K * C_OUT_PAD
TM_CAP = 1024            # rows per tile when row-tiling is actually needed


def _round_up(x, m):
    return ((x + m - 1) // m) * m


def _fused_convt_kernel(x_ref, w_ref, o_ref):
    # x_ref: (tm, 93)   w_ref: (93, 384)   o_ref: (tm, 384)
    s = jnp.dot(x_ref[...], w_ref[...], preferred_element_type=jnp.float32)
    # Original m2/m3/m4/m5 chain collapses to one select.
    o_ref[...] = jnp.where(s > 0, s, s * -8.48).astype(o_ref.dtype)


def prepare_weight(weight):
    """Hoisted one-time weight prep: (C_in, C_out, K) -> (93, K*128)."""
    assert weight.shape == (C_IN, C_OUT, K)
    w_ikc = jnp.transpose(weight, (0, 2, 1))                                  # (C_in, K, C_out)
    w_p = jnp.zeros((C_IN, K, C_OUT_PAD), jnp.float32).at[:, :, :C_OUT].set(w_ikc)
    return w_p.reshape(C_IN, N_OUT)                                           # (93, 384)


def model_forward(x_ncl, w_p):
    """x_ncl: (N, 93, L_in) float32; w_p: prepared weight (93, 384).

    Returns (N, 100, L_out) with L_out = (L_in - 1)*STRIDE - 2*PADDING + K.
    """
    N, Cin, Lin = x_ncl.shape
    assert Cin == C_IN and w_p.shape == (C_IN, N_OUT)
    L_out = (Lin - 1) * STRIDE - 2 * PADDING + K
    M = N * Lin

    # (N, C, L) -> (N*L, C). No zero-pad of the 93-wide contraction dim: 93 is
    # the full extent of the last dim, so the BlockSpec constraint is satisfied
    # and no input read bandwidth is wasted on pad lanes.
    x_mc = jnp.transpose(x_ncl, (0, 2, 1)).reshape(M, C_IN)

    # Grid / tile choice:
    #  * single grid step for small/medium M (no pointless split on 1-TC chips)
    #  * for large M, an even count of <=TM_CAP-row tiles (v7x dual-TC balance);
    #    Pallas masks the ragged last block, so no explicit row padding needed.
    if M <= TM_CAP:
        tm, grid_m = M, 1
    else:
        n_tiles = 2 * pl.cdiv(M, 2 * TM_CAP)           # even number of tiles
        tm = _round_up(pl.cdiv(M, n_tiles), 8)
        grid_m = pl.cdiv(M, tm)

    y = pl.pallas_call(
        _fused_convt_kernel,
        out_shape=jax.ShapeDtypeStruct((M, N_OUT), jnp.float32),
        grid_spec=pltpu.PrefetchScalarGridSpec(
            num_scalar_prefetch=0,
            grid=(grid_m,),
            in_specs=[
                pl.BlockSpec((tm, C_IN), lambda i: (i, 0)),
                # constant block index -> weight DMA'd once, kept resident
                pl.BlockSpec((C_IN, N_OUT), lambda i: (0, 0)),
            ],
            out_specs=pl.BlockSpec((tm, N_OUT), lambda i: (i, 0)),
        ),
        compiler_params=pltpu.CompilerParams(
            dimension_semantics=("parallel",),
        ),
    )(x_mc, w_p)                                         # (M, 384)

    # Phase interleave is a FREE reshape (stride == K => non-overlapping phases):
    #   y[n*Lin + li, k*128 + c] -> (n, li*K + k, c)
    y = y.reshape(N, Lin * K, C_OUT_PAD)
    # Single slice + transpose epilogue (fused into one copy pass under jit).
    return jnp.transpose(y[:, PADDING:PADDING + L_out, :C_OUT], (0, 2, 1))


def _reference(x_ncl, weight):
    """Direct (non-Pallas) conv-transpose + the ORIGINAL element-wise chain."""
    N, Cin, Lin = x_ncl.shape
    L_out = (Lin - 1) * STRIDE - 2 * PADDING + K
    contrib = jnp.einsum("ncl,cok->nokl", x_ncl, weight)  # (N, C_out, K, L_in)
    out = jnp.zeros((N, C_OUT, L_out), jnp.float32)
    for k in range(K):
        for li in range(Lin):
            lo = li * STRIDE - PADDING + k
            if 0 <= lo < L_out:
                out = out.at[:, :, lo].add(contrib[:, :, k, li])
    m1 = out
    m2 = m1 > 0
    m3 = m1 * -8.48
    m4 = jnp.where(m1 > 2.5, m1, m3)
    m5 = jnp.where(m2, m1, m4)
    return m5


if __name__ == "__main__":
    key = jax.random.PRNGKey(0)
    kx, kw = jax.random.split(key)

    # Small shapes consistent with the module: per-sample input (93, 23); batch=2.
    N, Lin = 2, 23
    x = jax.random.normal(kx, (N, C_IN, Lin), dtype=jnp.float32)

    # PyTorch ConvTranspose1d weight shape: (C_in, C_out, K), uniform(+-1/sqrt(fan_in)).
    fan_in = C_IN * K
    bound = 1.0 / (fan_in ** 0.5)
    weight = jax.random.uniform(kw, (C_IN, C_OUT, K), dtype=jnp.float32,
                                minval=-bound, maxval=bound)

    w_p = jax.block_until_ready(prepare_weight(weight))   # one-time weight prep
    fwd = jax.jit(model_forward)

    out = jax.block_until_ready(fwd(x, w_p))

    ref = _reference(x, weight)
    L_out = (Lin - 1) * STRIDE - 2 * PADDING + K
    assert out.shape == ref.shape == (N, C_OUT, L_out)
    assert jnp.allclose(out, ref, atol=1e-4, rtol=1e-4)

    print("KERNEL_OK")
</pallas_src>

<mosaic_0001>
module attributes {stable_mosaic.version = 11 : i64} {
  func.func @_fused_convt_kernel(%arg0: i32, %arg1: memref<46x93xf32, #tpu.memory_space<vmem>>, %arg2: memref<93x384xf32, #tpu.memory_space<vmem>>, %arg3: memref<46x384xf32, #tpu.memory_space<vmem>>) attributes {dimension_semantics = [#tpu.dimension_semantics<parallel>], iteration_bounds = array<i64: 1>, scalar_prefetch = 0 : i64, scratch_operands = 0 : i64, tpu.core_type = #tpu.core_type<tc>, window_params = [{transform_indices = @transform_0, window_bounds = array<i64: 46, 93>}, {pipeline_mode = #tpu.pipeline_mode<synchronous>, transform_indices = @transform_1, window_bounds = array<i64: 93, 384>}, {transform_indices = @transform_2, window_bounds = array<i64: 46, 384>}]} {
    %c0 = arith.constant 0 : index
    %c0_0 = arith.constant 0 : index
    %0 = vector.load %arg1[%c0, %c0_0] : memref<46x93xf32, #tpu.memory_space<vmem>>, vector<46x93xf32>
    %c0_1 = arith.constant 0 : index
    %c0_2 = arith.constant 0 : index
    %1 = vector.load %arg2[%c0_1, %c0_2] : memref<93x384xf32, #tpu.memory_space<vmem>>, vector<93x384xf32>
    %cst = arith.constant dense<0.000000e+00> : vector<46x384xf32>
    %2 = tpu.matmul %0, %1, %cst {dimension_numbers = #tpu.dot_dimension_numbers<[1], [0], [0], [1], [0, 0, 1, 1], [], []>} : vector<46x93xf32>, vector<93x384xf32>, vector<46x384xf32> -> vector<46x384xf32>
    %cst_3 = arith.constant 0.000000e+00 : f32
    %3 = vector.broadcast %cst_3 : f32 to vector<46x384xf32>
    %4 = arith.cmpf ogt, %2, %3 : vector<46x384xf32>
    %cst_4 = arith.constant -8.480000e+00 : f32
    %5 = vector.broadcast %cst_4 : f32 to vector<46x384xf32>
    %6 = arith.mulf %2, %5 : vector<46x384xf32>
    %7 = arith.select %4, %2, %6 : vector<46x384xi1>, vector<46x384xf32>
    %c0_5 = arith.constant 0 : index
    %c0_6 = arith.constant 0 : index
    %8 = vector.load %arg3[%c0_5, %c0_6] : memref<46x384xf32, #tpu.memory_space<vmem>>, vector<46x384xf32>
    tpu.vector_store %arg3[%c0_5, %c0_6], %7 {strides = array<i32>} : memref<46x384xf32, #tpu.memory_space<vmem>>, vector<46x384xf32>,
    return
  }
  func.func @transform_0(%arg0: i32) -> (i32, i32) {
    %c0_i32 = arith.constant 0 : i32
    %c0_i32_0 = arith.constant 0 : i32
    return %arg0, %c0_i32 : i32, i32
  }
  func.func @transform_1(%arg0: i32) -> (i32, i32) {
    %c0_i32 = arith.constant 0 : i32
    %c0_i32_0 = arith.constant 0 : i32
    %c0_i32_1 = arith.constant 0 : i32
    return %c0_i32, %c0_i32_0 : i32, i32
  }
  func.func @transform_2(%arg0: i32) -> (i32, i32) {
    %c0_i32 = arith.constant 0 : i32
    %c0_i32_0 = arith.constant 0 : i32
    return %arg0, %c0_i32 : i32, i32
  }
}

</mosaic_0001>

<llo_original>
// kernel: model_forward.1
$region0: #{model_forward.1}
  #allocation0 [shape = 'u32[]', space=smem, size = 0x4, offset = 0x4, fixed_abs, tag = 'smem constant byte address 0x4 - core index']
  #allocation1 [shape = 'u32[144,128]{1,0:T(1,128)}', space=vmem, size = 0x12000, scoped, tag = 'internal scratch']
  %s0 = inlined_call_operand.vmem [shape: f32[46,93], index: 0, kind: input, shape index: {}]
  %s1 = inlined_call_operand.hbm [shape: f32[93,384], index: 1, kind: input, shape index: {}]
  %s2 = inlined_call_operand.vmem [shape: f32[46,384], index: 2, kind: output, shape index: {}]
  %s3 = sld [smem:[#allocation0]]
  $region22: #{model_forward.1} parent=0
    _
  %s5 = ssub.s32 1, %s3
  %s6 = scalar_select 0, %s5, %s3
  $region1: #{model_forward.1} parent=0
    #allocation2 [shape = 'u8[147456]{0}', space=vmem, size = 0x24000, scoped, tag = 'input window, operand 1, single buffered']
    #allocation3 [shape = 's32[1]{0}', space=sflag, size = 0x4, scoped, tag = 'scoped memory for model_forward.1']
    %7 = vsyncpa [#allocation3], 0
    // Predicated region
    $region2: #{model_forward.1} parent=1 // pred_check
      _
    $region3: #{model_forward.1} parent=1 // pred_check_branch
      %9 = sbr.rel (0) target = $region5
    $region4: #{model_forward.1} parent=1 // pred_region
      _
    $region5: #{model_forward.1} parent=1 // pred_fallthru
      _
    // Predicated region
    $region6: #{model_forward.1} parent=1 // pred_check
      _
    $region7: #{model_forward.1} parent=1 // pred_check_branch
      %11 = sbr.rel (0) target = $region9
    $region8: #{model_forward.1} parent=1 // pred_region
      %s13 = ssub.s32 4608, 4608
      %14 = vsyncadd [#allocation3], %s13
      %s15 = sshll.u32 [#allocation2], 4
      %s16 = int_to_ptr.vmem [resolvable:$true] %s15
      %21 = dma.hbm_to_vmem [thread:$0]  %s1, 4608, %s16, [#allocation3], 384, 384, 24
    $region9: #{model_forward.1} parent=1 // pred_fallthru
      _
    // Predicated region
    $region10: #{model_forward.1} parent=1 // pred_check
      _
    $region11: #{model_forward.1} parent=1 // pred_check_branch
      %23 = sbr.rel (0) target = $region13
    $region12: #{model_forward.1} parent=1 // pred_region
      %24 = dma.done [#allocation3], 4608
    $region13: #{model_forward.1} parent=1 // pred_fallthru
      _
    %v25 = vld [vmem:[%s0] sm:$0xff]
    %v26 = vld [vmem:[%s0 + $0x8] sm:$0xff]
    %v27 = vld [vmem:[%s0 + $0x10] sm:$0xff]
    %v28 = vld [vmem:[%s0 + $0x18] sm:$0xff]
    %v29 = vld [vmem:[%s0 + $0x20] sm:$0xff]
    %v30 = vld [vmem:[%s0 + $0x28] sm:$0x3f]
    %v31 = vld [vmem:[#allocation2] sm:$0xff]
    %v32 = vld [vmem:[#allocation2 + $0x8] sm:$0xff]
    %v33 = vld [vmem:[#allocation2 + $0x10] sm:$0xff]
    %v34 = vld [vmem:[#allocation2 + $0x18] sm:$0xff]
    %v35 = vld [vmem:[#allocation2 + $0x20] sm:$0xff]
    %v36 = vld [vmem:[#allocation2 + $0x28] sm:$0xff]
    %v37 = vld [vmem:[#allocation2 + $0x30] sm:$0xff]
    %v38 = vld [vmem:[#allocation2 + $0x38] sm:$0xff]
    %v39 = vld [vmem:[#allocation2 + $0x40] sm:$0xff]
    %v40 = vld [vmem:[#allocation2 + $0x48] sm:$0xff]
    %v41 = vld [vmem:[#allocation2 + $0x50] sm:$0xff]
    %v42 = vld [vmem:[#allocation2 + $0x58] sm:$0xff]
    %v43 = vld [vmem:[#allocation2 + $0x60] sm:$0xff]
    %v44 = vld [vmem:[#allocation2 + $0x68] sm:$0xff]
    %v45 = vld [vmem:[#allocation2 + $0x70] sm:$0xff]
    %v46 = vld [vmem:[#allocation2 + $0x78] sm:$0xff]
    %v47 = vld [vmem:[#allocation2 + $0x80] sm:$0xff]
    %v48 = vld [vmem:[#allocation2 + $0x88] sm:$0xff]
    %v49 = vld [vmem:[#allocation2 + $0x90] sm:$0xff]
    %v50 = vld [vmem:[#allocation2 + $0x98] sm:$0xff]
    %v51 = vld [vmem:[#allocation2 + $0xa0] sm:$0xff]
    %v52 = vld [vmem:[#allocation2 + $0xa8] sm:$0xff]
    %v53 = vld [vmem:[#allocation2 + $0xb0] sm:$0xff]
    %v54 = vld [vmem:[#allocation2 + $0xb8] sm:$0xff]
    %v55 = vld [vmem:[#allocation2 + $0xc0] sm:$0xff]
    %v56 = vld [vmem:[#allocation2 + $0xc8] sm:$0xff]
    %v57 = vld [vmem:[#allocation2 + $0xd0] sm:$0xff]
    %v58 = vld [vmem:[#allocation2 + $0xd8] sm:$0xff]
    %v59 = vld [vmem:[#allocation2 + $0xe0] sm:$0xff]
    %v60 = vld [vmem:[#allocation2 + $0xe8] sm:$0xff]
    %v61 = vld [vmem:[#allocation2 + $0xf0] sm:$0xff]
    %v62 = vld [vmem:[#allocation2 + $0xf8] sm:$0xff]
    %v63 = vld [vmem:[#allocation2 + $0x100] sm:$0xff]
    %v64 = vld [vmem:[#allocation2 + $0x108] sm:$0x1f]
    %v65 = vld [vmem:[#allocation2 + $0x110] sm:$0x1f]
    %v66 = vld [vmem:[#allocation2 + $0x118] sm:$0x1f]
    %vm67 = vcmask 760832
    %v69 = vsel %vm67, %v25, 0
    %v72 = vsel %vm67, %v26, 0
    %v75 = vsel %vm67, %v27, 0
    %v78 = vsel %vm67, %v28, 0
    %v81 = vsel %vm67, %v29, 0
    %v84 = vsel %vm67, %v30, 0
    %vm86 = vcmask 1044480
    %v88 = vsel %vm86, %v64, 0
    %v91 = vsel %vm86, %v65, 0
    %v94 = vsel %vm86, %v66, 0
    %96 = vmatprep.subr.mxu0 %v32
    %97 = vmatpush1.msra.mxu0 %v31
    %98 = vmatprep.subr.mxu0 %v35
    %99 = vmatpush1.msra.mxu0 %v34
    %100 = vmatprep.subr.mxu0 %v38
    %101 = vmatpush1.msra.mxu0 %v37
    %102 = vmatprep.subr.mxu0 %v41
    %103 = vmatpush1.msra.mxu0 %v40
    %104 = vmatprep.subr.mxu0 %v44
    %105 = vmatpush1.msra.mxu0 %v43
    %106 = vmatprep.subr.mxu0 %v47
    %107 = vmatpush1.msra.mxu0 %v46
    %108 = vmatprep.subr.mxu0 %v50
    %109 = vmatpush1.msra.mxu0 %v49
    %110 = vmatprep.subr.mxu0 %v53
    %111 = vmatpush1.msra.mxu0 %v52
    %112 = vmatprep.subr.mxu0 %v56
    %113 = vmatpush1.msra.mxu0 %v55
    %114 = vmatprep.subr.mxu0 %v59
    %115 = vmatpush1.msra.mxu0 %v58
    %116 = vmatprep.subr.mxu0 %v62
    %117 = vmatpush1.msra.mxu0 %v61
    %118 = vmatprep.subr.mxu0 %v91
    %119 = vmatpush1.msra.mxu0 %v88
    %120 = vmatprep.subr.mxu0 0.0
    %121 = vmatpush1.msra.mxu0 0.0
    %122 = vmatprep.subr.mxu0 0.0
    %123 = vmatpush1.msra.mxu0 0.0
    %124 = vmatprep.subr.mxu0 0.0
    %125 = vmatpush1.msra.mxu0 0.0
    %126 = vmatprep.subr.mxu0 0.0
    %127 = vmatpush1.msra.mxu0 0.0
    %128 = vmatprep.subr.mxu0 0.0
    %129 = vmatpush1.msra.mxu0 0.0
    %130 = vmatprep.subr.mxu0 0.0
    %131 = vmatpush1.msra.mxu0 0.0
    %132 = vmatprep.subr.mxu0 0.0
    %133 = vmatpush1.msra.mxu0 0.0
    %134 = vmatprep.subr.mxu0 0.0
    %135 = vmatpush1.msra.mxu0 0.0
    %136 = vmatprep.subr.mxu0 0.0
    %137 = vmatpush1.msra.mxu0 0.0
    %138 = vmatprep.subr.mxu0 0.0
    %139 = vmatpush1.msra.mxu0 0.0
    %140 = vmatprep.subr.mxu0 0.0
    %141 = vmatpush1.msra.mxu0 0.0
    %142 = vmatprep.subr.mxu0 0.0
    %143 = vmatpush1.msra.mxu0 0.0
    %144 = vmatprep.subr.mxu0 0.0
    %145 = vmatpush1.msra.mxu0 0.0
    %146 = vmatprep.subr.mxu0 0.0
    %147 = vmatpush1.msra.mxu0 0.0
    %148 = vmatprep.subr.mxu0 0.0
    %149 = vmatpush1.msra.mxu0 0.0
    %150 = vmatprep.subr.mxu0 0.0
    %151 = vmatpush1.msra.mxu0 0.0
    %152 = vmatprep.subr.mxu0 0.0
    %153 = vmatpush1.msra.mxu0 0.0
    %154 = vmatprep.subr.mxu0 0.0
    %155 = vmatpush1.msra.mxu0 0.0
    %156 = vmatprep.subr.mxu0 0.0
    %157 = vmatpush1.msra.mxu0 0.0
    %158 = vmatprep.subr.mxu0 0.0
    %159 = vmatpush1.msra.mxu0 0.0
    %160 = vmatprep.mubr.f32.mxu0 0.0
    %161 = vmatmul.mubr.f32.gmra.mrb[0].mxu0 %v69
    %v162 = vpop.f32.mrb[0].mxu0
    %v163 = vadd.f32 0.0, %v162
    %v164 = vpop.f32.mrb[0].mxu0
    %v165 = vadd.f32 0.0, %v164
    %166 = vmatprep.mubr.f32.mxu0 0.0
    %167 = vmatmul.mubr.f32.gmra.mrb[0].mxu0 %v72
    %v168 = vpop.f32.mrb[0].mxu0
    %v169 = vadd.f32 0.0, %v168
    %v170 = vpop.f32.mrb[0].mxu0
    %v171 = vadd.f32 0.0, %v170
    %172 = vmatprep.mubr.f32.mxu0 0.0
    %173 = vmatmul.mubr.f32.gmra.mrb[0].mxu0 %v75
    %v174 = vpop.f32.mrb[0].mxu0
    %v175 = vadd.f32 0.0, %v174
    %v176 = vpop.f32.mrb[0].mxu0
    %v177 = vadd.f32 0.0, %v176
    %178 = vmatprep.mubr.f32.mxu0 0.0
    %179 = vmatmul.mubr.f32.gmra.mrb[0].mxu0 %v78
    %v180 = vpop.f32.mrb[0].mxu0
    %v181 = vadd.f32 0.0, %v180
    %v182 = vpop.f32.mrb[0].mxu0
    %v183 = vadd.f32 0.0, %v182
    %184 = vmatprep.mubr.f32.mxu0 0.0
    %185 = vmatmul.mubr.f32.gmra.mrb[0].mxu0 %v81
    %v186 = vpop.f32.mrb[0].mxu0
    %v187 = vadd.f32 0.0, %v186
    %v188 = vpop.f32.mrb[0].mxu0
    %v189 = vadd.f32 0.0, %v188
    %190 = vmatprep.mubr.f32.mxu0 0.0
    %191 = vmatmul.mubr.f32.gmra.mrb[0].mxu0 %v84
    %v192 = vpop.f32.mrb[0].mxu0
    %v193 = vadd.f32 0.0, %v192
    %v194 = vpop.f32.mrb[0].mxu0
    %v195 = vadd.f32 0.0, %v194
    %196 = vdwg.mxu0
    %197 = vmatprep.subr.mxu0 0.0
    %198 = vmatpush1.msra.mxu0 %v33
    %199 = vmatprep.subr.mxu0 0.0
    %200 = vmatpush1.msra.mxu0 %v36
    %201 = vmatprep.subr.mxu0 0.0
    %202 = vmatpush1.msra.mxu0 %v39
    %203 = vmatprep.subr.mxu0 0.0
    %204 = vmatpush1.msra.mxu0 %v42
    %205 = vmatprep.subr.mxu0 0.0
    %206 = vmatpush1.msra.mxu0 %v45
    %207 = vmatprep.subr.mxu0 0.0
    %208 = vmatpush1.msra.mxu0 %v48
    %209 = vmatprep.subr.mxu0 0.0
    %210 = vmatpush1.msra.mxu0 %v51
    %211 = vmatprep.subr.mxu0 0.0
    %212 = vmatpush1.msra.mxu0 %v54
    %213 = vmatprep.subr.mxu0 0.0
    %214 = vmatpush1.msra.mxu0 %v57
    %215 = vmatprep.subr.mxu0 0.0
    %216 = vmatpush1.msra.mxu0 %v60
    %217 = vmatprep.subr.mxu0 0.0
    %218 = vmatpush1.msra.mxu0 %v63
    %219 = vmatprep.subr.mxu0 0.0
    %220 = vmatpush1.msra.mxu0 %v94
    %221 = vmatprep.subr.mxu0 0.0
    %222 = vmatpush1.msra.mxu0 0.0
    %223 = vmatprep.subr.mxu0 0.0
    %224 = vmatpush1.msra.mxu0 0.0
    %225 = vmatprep.subr.mxu0 0.0
    %226 = vmatpush1.msra.mxu0 0.0
    %227 = vmatprep.subr.mxu0 0.0
    %228 = vmatpush1.msra.mxu0 0.0
    %229 = vmatprep.subr.mxu0 0.0
    %230 = vmatpush1.msra.mxu0 0.0
    %231 = vmatprep.subr.mxu0 0.0
    %232 = vmatpush1.msra.mxu0 0.0
    %233 = vmatprep.subr.mxu0 0.0
    %234 = vmatpush1.msra.mxu0 0.0
    %235 = vmatprep.subr.mxu0 0.0
    %236 = vmatpush1.msra.mxu0 0.0
    %237 = vmatprep.subr.mxu0 0.0
    %238 = vmatpush1.msra.mxu0 0.0
    %239 = vmatprep.subr.mxu0 0.0
    %240 = vmatpush1.msra.mxu0 0.0
    %241 = vmatprep.subr.mxu0 0.0
    %242 = vmatpush1.msra.mxu0 0.0
    %243 = vmatprep.subr.mxu0 0.0
    %244 = vmatpush1.msra.mxu0 0.0
    %245 = vmatprep.subr.mxu0 0.0
    %246 = vmatpush1.msra.mxu0 0.0
    %247 = vmatprep.subr.mxu0 0.0
    %248 = vmatpush1.msra.mxu0 0.0
    %249 = vmatprep.subr.mxu0 0.0
    %250 = vmatpush1.msra.mxu0 0.0
    %251 = vmatprep.subr.mxu0 0.0
    %252 = vmatpush1.msra.mxu0 0.0
    %253 = vmatprep.subr.mxu0 0.0
    %254 = vmatpush1.msra.mxu0 0.0
    %255 = vmatprep.subr.mxu0 0.0
    %256 = vmatpush1.msra.mxu0 0.0
    %257 = vmatprep.subr.mxu0 0.0
    %258 = vmatpush1.msra.mxu0 0.0
    %259 = vmatprep.subr.mxu0 0.0
    %260 = vmatpush1.msra.mxu0 0.0
    %261 = vmatprep.mubr.f32.mxu0 0.0
    %262 = vmatmul.mubr.f32.gmra.mrb[0].mxu0 %v69
    %v263 = vpop.f32.mrb[0].mxu0
    %v264 = vadd.f32 0.0, %v263
    %v265 = vpop.f32.mrb[0].mxu0
    %266 = vmatprep.mubr.f32.mxu0 0.0
    %267 = vmatmul.mubr.f32.gmra.mrb[0].mxu0 %v72
    %v268 = vpop.f32.mrb[0].mxu0
    %v269 = vadd.f32 0.0, %v268
    %v270 = vpop.f32.mrb[0].mxu0
    %271 = vmatprep.mubr.f32.mxu0 0.0
    %272 = vmatmul.mubr.f32.gmra.mrb[0].mxu0 %v75
    %v273 = vpop.f32.mrb[0].mxu0
    %v274 = vadd.f32 0.0, %v273
    %v275 = vpop.f32.mrb[0].mxu0
    %276 = vmatprep.mubr.f32.mxu0 0.0
    %277 = vmatmul.mubr.f32.gmra.mrb[0].mxu0 %v78
    %v278 = vpop.f32.mrb[0].mxu0
    %v279 = vadd.f32 0.0, %v278
    %v280 = vpop.f32.mrb[0].mxu0
    %281 = vmatprep.mubr.f32.mxu0 0.0
    %282 = vmatmul.mubr.f32.gmra.mrb[0].mxu0 %v81
    %v283 = vpop.f32.mrb[0].mxu0
    %v284 = vadd.f32 0.0, %v283
    %v285 = vpop.f32.mrb[0].mxu0
    %286 = vmatprep.mubr.f32.mxu0 0.0
    %287 = vmatmul.mubr.f32.gmra.mrb[0].mxu0 %v84
    %v288 = vpop.f32.mrb[0].mxu0
    %v289 = vadd.f32 0.0, %v288
    %v290 = vpop.f32.mrb[0].mxu0
    %291 = vdwg.mxu0
    %vm292 = vcmp.gt.f32.partialorder %v163, 0.0
    %vm293 = vcmp.gt.f32.partialorder %v165, 0.0
    %vm294 = vcmp.gt.f32.partialorder %v264, 0.0
    %vm295 = vcmp.gt.f32.partialorder %v169, 0.0
    %vm296 = vcmp.gt.f32.partialorder %v171, 0.0
    %vm297 = vcmp.gt.f32.partialorder %v269, 0.0
    %vm298 = vcmp.gt.f32.partialorder %v175, 0.0
    %vm299 = vcmp.gt.f32.partialorder %v177, 0.0
    %vm300 = vcmp.gt.f32.partialorder %v274, 0.0
    %vm301 = vcmp.gt.f32.partialorder %v181, 0.0
    %vm302 = vcmp.gt.f32.partialorder %v183, 0.0
    %vm303 = vcmp.gt.f32.partialorder %v279, 0.0
    %vm304 = vcmp.gt.f32.partialorder %v187, 0.0
    %vm305 = vcmp.gt.f32.partialorder %v189, 0.0
    %vm306 = vcmp.gt.f32.partialorder %v284, 0.0
    %vm307 = vcmp.gt.f32.partialorder %v193, 0.0
    %vm308 = vcmp.gt.f32.partialorder %v195, 0.0
    %vm309 = vcmp.gt.f32.partialorder %v289, 0.0
    %v310 = vmul.f32 %v163, -8.48
    %v311 = vmul.f32 %v165, -8.48
    %v312 = vmul.f32 %v264, -8.48
    %v313 = vmul.f32 %v169, -8.48
    %v314 = vmul.f32 %v171, -8.48
    %v315 = vmul.f32 %v269, -8.48
    %v316 = vmul.f32 %v175, -8.48
    %v317 = vmul.f32 %v177, -8.48
    %v318 = vmul.f32 %v274, -8.48
    %v319 = vmul.f32 %v181, -8.48
    %v320 = vmul.f32 %v183, -8.48
    %v321 = vmul.f32 %v279, -8.48
    %v322 = vmul.f32 %v187, -8.48
    %v323 = vmul.f32 %v189, -8.48
    %v324 = vmul.f32 %v284, -8.48
    %v325 = vmul.f32 %v193, -8.48
    %v326 = vmul.f32 %v195, -8.48
    %v327 = vmul.f32 %v289, -8.48
    %v328 = vsel %vm292, %v163, %v310
    %v329 = vsel %vm293, %v165, %v311
    %v330 = vsel %vm294, %v264, %v312
    %v331 = vsel %vm295, %v169, %v313
    %v332 = vsel %vm296, %v171, %v314
    %v333 = vsel %vm297, %v269, %v315
    %v334 = vsel %vm298, %v175, %v316
    %v335 = vsel %vm299, %v177, %v317
    %v336 = vsel %vm300, %v274, %v318
    %v337 = vsel %vm301, %v181, %v319
    %v338 = vsel %vm302, %v183, %v320
    %v339 = vsel %vm303, %v279, %v321
    %v340 = vsel %vm304, %v187, %v322
    %v341 = vsel %vm305, %v189, %v323
    %v342 = vsel %vm306, %v284, %v324
    %v343 = vsel %vm307, %v193, %v325
    %v344 = vsel %vm308, %v195, %v326
    %v345 = vsel %vm309, %v289, %v327
    %346 = vst [vmem:[%s2] sm:$0xff] %v328
    %347 = vst [vmem:[%s2 + $0x8] sm:$0xff] %v329
    %348 = vst [vmem:[%s2 + $0x10] sm:$0xff] %v330
    %349 = vst [vmem:[%s2 + $0x18] sm:$0xff] %v331
    %350 = vst [vmem:[%s2 + $0x20] sm:$0xff] %v332
    %351 = vst [vmem:[%s2 + $0x28] sm:$0xff] %v333
    %352 = vst [vmem:[%s2 + $0x30] sm:$0xff] %v334
    %353 = vst [vmem:[%s2 + $0x38] sm:$0xff] %v335
    %354 = vst [vmem:[%s2 + $0x40] sm:$0xff] %v336
    %355 = vst [vmem:[%s2 + $0x48] sm:$0xff] %v337
    %356 = vst [vmem:[%s2 + $0x50] sm:$0xff] %v338
    %357 = vst [vmem:[%s2 + $0x58] sm:$0xff] %v339
    %358 = vst [vmem:[%s2 + $0x60] sm:$0xff] %v340
    %359 = vst [vmem:[%s2 + $0x68] sm:$0xff] %v341
    %360 = vst [vmem:[%s2 + $0x70] sm:$0xff] %v342
    %361 = vst [vmem:[%s2 + $0x78] sm:$0x3f] %v343
    %362 = vst [vmem:[%s2 + $0x80] sm:$0x3f] %v344
    %363 = vst [vmem:[%s2 + $0x88] sm:$0x3f] %v345
    // Predicated region
    $region14: #{model_forward.1} parent=1 // pred_check
      _
    $region15: #{model_forward.1} parent=1 // pred_check_branch
      %365 = sbr.rel (0) target = $region17
    $region16: #{model_forward.1} parent=1 // pred_region
      _
    $region17: #{model_forward.1} parent=1 // pred_fallthru
      _
    // Predicated region
    $region18: #{model_forward.1} parent=1 // pred_check
      _
    $region19: #{model_forward.1} parent=1 // pred_check_branch
      %367 = sbr.rel (0) target = $region21
    $region20: #{model_forward.1} parent=1 // pred_region
      _
    $region21: #{model_forward.1} parent=1 // pred_fallthru
      _
    %368 = vsyncpa [#allocation3], 1

</llo_original>
